<compile_context>
chip_gen: v5e
topology: v5e:2x2
jax: 0.10.0
libtpu: 0.0.40
codegen_flags: <defaults>
</compile_context>

<pallas_src>
import math

import jax
import jax.numpy as jnp
from jax.experimental import pallas as pl
from jax.experimental.pallas import tpu as pltpu


def _fc_identity_kernel(x_ref, o_ref):
    # Empty nn.Sequential == identity over the flattened features.
    o_ref[...] = x_ref[...]


def _lane_dense_shape(total):
    """Pick (rows, cols) with cols a multiple of 128 (lane-dense last dim).

    Prefer the largest lane width (up to 1024) that divides `total`; among
    those, prefer one whose row count is a multiple of 8 so blocks tile the
    sublane dimension cleanly.  Returns None if no 128-multiple divides total.
    """
    candidates = [c for c in (1024, 512, 256, 128) if total % c == 0]
    if not candidates:
        return None
    for c in candidates:
        if (total // c) % 8 == 0:
            return total // c, c
    return total // candidates[0], candidates[0]


def _choose_block_rows(rows, cols, itemsize, target_bytes=2 * 1024 * 1024):
    """Byte-targeted block sizing: ~2 MiB per block, rows a multiple of 8.

    2 MiB blocks => <= ~8 MiB of VMEM with double-buffered in+out, which fits
    the default scoped-VMEM limits on v5e/v6e/v7x while staying in the ~85%
    of HBM roofline regime (vs ~63% for 256 KiB-class tiles).
    """
    if rows <= 8:
        # Full-extent block (allowed by the full-dim exception).
        return rows
    br = target_bytes // (cols * itemsize)
    br = (br // 8) * 8
    br = max(8, min(br, (rows // 8) * 8))
    return br


@jax.jit
def _fc_identity_materialized(x):
    """Materialized identity over the flattened input, as a Pallas copy."""
    n = x.shape[0]
    feat = math.prod(x.shape[1:])
    x_flat = x.reshape(n, feat)

    total = n * feat
    shaped = _lane_dense_shape(total)
    if shaped is None:
        # TODO(synk): element count not a multiple of 128 — the exact (and
        # optimal) implementation of the empty Sequential is the reshape
        # itself; skip the kernel rather than emit masked partial stores.
        return x_flat

    rows, cols = shaped
    x2 = x_flat.reshape(rows, cols)          # lane-dense 2-D view (metadata)
    itemsize = x2.dtype.itemsize
    block_rows = _choose_block_rows(rows, cols, itemsize)
    grid = (pl.cdiv(rows, block_rows),)      # partial last block is masked

    out2 = pl.pallas_call(
        _fc_identity_kernel,
        out_shape=jax.ShapeDtypeStruct((rows, cols), x2.dtype),
        grid_spec=pltpu.PrefetchScalarGridSpec(
            num_scalar_prefetch=0,
            grid=grid,
            in_specs=[pl.BlockSpec((block_rows, cols), lambda i: (i, 0))],
            out_specs=pl.BlockSpec((block_rows, cols), lambda i: (i, 0)),
        ),
        # Identity copy: reuse the input's HBM buffer for the output so XLA
        # does not allocate (and later free) a second tensor-sized buffer.
        input_output_aliases={0: 0},
        # Advisory: zero compute, 2x tensor bytes of HBM traffic.
        cost_estimate=pl.CostEstimate(
            flops=0,
            transcendentals=0,
            bytes_accessed=2 * rows * cols * itemsize,
        ),
        compiler_params=pltpu.CompilerParams(
            # Pure element-parallel copy: no reduction axis anywhere.
            # TODO(synk): pltpu.CORE_PARALLEL here on v7x (2 TCs per chip).
            dimension_semantics=("parallel",),
        ),
    )(x2)

    return out2.reshape(n, feat)


def mlp_autoencoder_forward(x, materialize=False):
    """Pallas equivalent of mlpAutoEncoder.forward.

    x: [N, C, H, W] float32 (NCHW, matching PyTorch).
    Returns the (empty) fc stack applied to the flattened input: [N, C*H*W].

    Default path: metadata-only reshape (zero HBM traffic) — the fastest
    correct rendering of the empty fc Sequential on every TPU generation.
    `materialize=True` routes through the Pallas identity-copy kernel (the
    scaffold real fc layers would replace).
    """
    n = x.shape[0]
    feat = math.prod(x.shape[1:])
    if not materialize:
        return x.reshape(n, feat)
    return _fc_identity_materialized(x)


if __name__ == "__main__":
    key = jax.random.PRNGKey(0)
    # Small shapes consistent with an image autoencoder: N=2, C=4, H=W=16.
    x = jax.random.normal(key, (2, 4, 16, 16), dtype=jnp.float32)

    expected = x.reshape(2, -1)

    # Default (fastest) path: metadata-only reshape, no kernel emitted.
    y_fast = mlp_autoencoder_forward(x)
    jax.block_until_ready(y_fast)
    assert y_fast.shape == (2, 4 * 16 * 16)
    assert jnp.allclose(y_fast, expected)

    # Materialized path: exercises the Pallas identity kernel once.
    y_kernel = mlp_autoencoder_forward(x, materialize=True)
    jax.block_until_ready(y_kernel)
    assert y_kernel.shape == (2, 4 * 16 * 16)
    assert jnp.allclose(y_kernel, expected)

    print("KERNEL_OK")
</pallas_src>

<mosaic_0001>
module attributes {stable_mosaic.version = 11 : i64} {
  func.func @_fc_identity_kernel(%arg0: i32, %arg1: memref<8x256xf32, #tpu.memory_space<vmem>>, %arg2: memref<8x256xf32, #tpu.memory_space<vmem>>) attributes {dimension_semantics = [#tpu.dimension_semantics<parallel>], iteration_bounds = array<i64: 1>, scalar_prefetch = 0 : i64, scratch_operands = 0 : i64, tpu.core_type = #tpu.core_type<tc>, window_params = [{transform_indices = @transform_0, window_bounds = array<i64: 8, 256>}, {transform_indices = @transform_1, window_bounds = array<i64: 8, 256>}]} {
    %c0 = arith.constant 0 : index
    %c0_0 = arith.constant 0 : index
    %0 = vector.load %arg1[%c0, %c0_0] : memref<8x256xf32, #tpu.memory_space<vmem>>, vector<8x256xf32>
    %c0_1 = arith.constant 0 : index
    %c0_2 = arith.constant 0 : index
    %1 = vector.load %arg2[%c0_1, %c0_2] : memref<8x256xf32, #tpu.memory_space<vmem>>, vector<8x256xf32>
    tpu.vector_store %arg2[%c0_1, %c0_2], %0 {strides = array<i32>} : memref<8x256xf32, #tpu.memory_space<vmem>>, vector<8x256xf32>,
    return
  }
  func.func @transform_0(%arg0: i32) -> (i32, i32) {
    %c0_i32 = arith.constant 0 : i32
    %c0_i32_0 = arith.constant 0 : i32
    return %arg0, %c0_i32 : i32, i32
  }
  func.func @transform_1(%arg0: i32) -> (i32, i32) {
    %c0_i32 = arith.constant 0 : i32
    %c0_i32_0 = arith.constant 0 : i32
    return %arg0, %c0_i32 : i32, i32
  }
}

</mosaic_0001>

<llo_original>
// kernel: _fc_identity_materialized.1
$region0: #{_fc_identity_materialized.1}
  #allocation0 [shape = 'u32[]', space=smem, size = 0x4, offset = 0x4, fixed_abs, tag = 'smem constant byte address 0x4 - core index']
  #allocation1 [shape = 'u32[72,128]{1,0:T(1,128)}', space=vmem, size = 0x9000, scoped, tag = 'internal scratch']
  %s0 = inlined_call_operand.vmem [shape: f32[8,256], index: 0, kind: input, shape index: {}, may-alias: {0,1}]
  %s1 = inlined_call_operand.vmem [shape: f32[8,256], index: 1, kind: output, shape index: {}, may-alias: {0,1}]
  %s2 = sld [smem:[#allocation0]]
  $region14: #{_fc_identity_materialized.1} parent=0
    _
  %s4 = ssub.s32 1, %s2
  %s5 = scalar_select 0, %s4, %s2
  // Predicated region
  $region2: #{_fc_identity_materialized.1} parent=0 // pred_check
    _
  $region3: #{_fc_identity_materialized.1} parent=0 // pred_check_branch
    %7 = sbr.rel (0) target = $region5
  $region4: #{_fc_identity_materialized.1} parent=0 // pred_region
    _
  $region5: #{_fc_identity_materialized.1} parent=0 // pred_fallthru
    _
  %v8 = vld [vmem:[%s0] sm:$0xff]
  %v9 = vld [vmem:[%s0 + $0x8] sm:$0xff]
  %10 = vst [vmem:[%s1] sm:$0xff] %v8
  %11 = vst [vmem:[%s1 + $0x8] sm:$0xff] %v9
  // Predicated region
  $region6: #{_fc_identity_materialized.1} parent=0 // pred_check
    _
  $region7: #{_fc_identity_materialized.1} parent=0 // pred_check_branch
    %13 = sbr.rel (0) target = $region9
  $region8: #{_fc_identity_materialized.1} parent=0 // pred_region
    _
  $region9: #{_fc_identity_materialized.1} parent=0 // pred_fallthru
    _
  // Predicated region
  $region10: #{_fc_identity_materialized.1} parent=0 // pred_check
    _
  $region11: #{_fc_identity_materialized.1} parent=0 // pred_check_branch
    %15 = sbr.rel (0) target = $region13
  $region12: #{_fc_identity_materialized.1} parent=0 // pred_region
    _
  $region13: #{_fc_identity_materialized.1} parent=0 // pred_fallthru
    _

</llo_original>
